<compile_context>
chip_gen: v7x
topology: tpu7x:2x2x1
jax: 0.10.0
libtpu: 0.0.40
codegen_flags: <defaults>
</compile_context>

<pallas_src>
import jax
import jax.numpy as jnp
from jax import lax
from jax.experimental import pallas as pl
from jax.experimental.pallas import tpu as pltpu


def _round_up(x: int, m: int) -> int:
    return ((x + m - 1) // m) * m


def _sequential_mlp_kernel(x_ref, w1_ref, b1_ref, w2_ref, b2_ref, o_ref):
    """Fused forward of Sequential(Flatten, Linear, ReLU, Linear).

    x_ref : [TM, D_in]          f32  (flattened batch tile; cast to bf16 in-kernel)
    w1_ref: [H_pad, D_in]       bf16 (torch layout [out, in], hidden zero-padded to 128)
    b1_ref: [1, H_pad]          f32
    w2_ref: [D_out_pad, H_pad]  bf16 (torch layout, out_features zero-padded to 128)
    b2_ref: [1, D_out_pad]      f32
    o_ref : [TM, D_out_pad]     f32  (lane-dense output slab)
    """
    # Cast on the VPU; x stays f32 in HBM so it is only read once at 4 B/elem.
    x = x_ref[...].astype(jnp.bfloat16)

    # Linear 1: contract over in_features directly (no transposed weight copy).
    h = lax.dot_general(
        x, w1_ref[...],
        dimension_numbers=(((1,), (1,)), ((), ())),
        preferred_element_type=jnp.float32,
    )
    h = h + b1_ref[...]          # bias in f32
    h = jnp.maximum(h, 0.0)      # ReLU on the VPU (full lane-dense [TM, 128])

    # Linear 2 (output padded to a lane-dense 128-wide slab).
    y = lax.dot_general(
        h.astype(jnp.bfloat16), w2_ref[...],
        dimension_numbers=(((1,), (1,)), ((), ())),
        preferred_element_type=jnp.float32,
    )
    y = y + b2_ref[...]
    o_ref[...] = y.astype(o_ref.dtype)


def sequential_forward(x_nchw, w1, b1, w2, b2, *, tm_max: int = 1024):
    """Mirror of Sequential(Flatten(), Linear(D_in,H), ReLU(), Linear(H,D_out)).forward.

    x_nchw: [N, C, H, W] float32
    w1    : [H_hidden, D_in]  (torch Linear weight layout: [out_features, in_features])
    b1    : [H_hidden]
    w2    : [D_out, H_hidden]
    b2    : [D_out]
    returns [N, D_out] float32
    """
    N = int(x_nchw.shape[0])
    d_in = int(x_nchw.shape[1] * x_nchw.shape[2] * x_nchw.shape[3])
    hidden = int(w1.shape[0])
    d_out = int(w2.shape[0])
    h_pad = _round_up(hidden, 128)        # lane-dense hidden width
    d_out_pad = _round_up(d_out, 128)     # lane-dense output width

    # Flatten module (start_dim=1): NCHW row-major -> [N, C*H*W], same as torch.
    # No cast, no pad: the kernel reads f32 directly and casts in VMEM.
    x_flat = x_nchw.reshape(N, d_in)

    # Batch tiling. No host-side padding of x: boundary block may be partial.
    if N <= 8:
        tm = N                            # block == full batch dim (allowed un-tiled)
    else:
        n8 = _round_up(N, 8)
        tm = min(tm_max, n8)
        # Keep >= 2 grid steps so the "parallel" axis can be split across
        # v7x's two TensorCores for mid-size batches.
        half = max(_round_up(pl.cdiv(n8, 2), 8), 8)
        tm = min(tm, half)
    grid_m = pl.cdiv(N, tm)

    # Weights: torch [out, in] layout, zero-padded to lane-dense widths, bf16 operands.
    # (Padded hidden units produce exact zeros through bias+ReLU, so results match.)
    w1_bf = jnp.pad(w1.astype(jnp.bfloat16), ((0, h_pad - hidden), (0, 0)))
    b1_2d = jnp.pad(b1.astype(jnp.float32), (0, h_pad - hidden)).reshape(1, h_pad)
    w2_bf = jnp.pad(
        w2.astype(jnp.bfloat16), ((0, d_out_pad - d_out), (0, h_pad - hidden))
    )
    b2_2d = jnp.pad(b2.astype(jnp.float32), (0, d_out_pad - d_out)).reshape(1, d_out_pad)

    # Cost estimate reflecting what this pallas_call itself touches.
    flops = 2 * N * (d_in * h_pad + h_pad * d_out_pad)
    bytes_accessed = (
        N * d_in * 4                      # x (f32, read once)
        + h_pad * d_in * 2                # w1 (bf16)
        + d_out_pad * h_pad * 2           # w2 (bf16)
        + (h_pad + d_out_pad) * 4         # biases (f32)
        + N * d_out_pad * 4               # output slab (f32)
    )
    cost = pl.CostEstimate(
        flops=flops, transcendentals=0, bytes_accessed=bytes_accessed
    )

    # Deeper x pipelining only when the grid is long enough for it to help.
    if grid_m >= 3 and hasattr(pl, "Buffered"):
        x_spec = pl.BlockSpec((tm, d_in), lambda i: (i, 0),
                              pipeline_mode=pl.Buffered(3))
    else:
        x_spec = pl.BlockSpec((tm, d_in), lambda i: (i, 0))

    out = pl.pallas_call(
        _sequential_mlp_kernel,
        out_shape=jax.ShapeDtypeStruct((N, d_out_pad), jnp.float32),
        grid=(grid_m,),
        in_specs=[
            x_spec,                                            # batch tile (f32)
            pl.BlockSpec((h_pad, d_in), lambda i: (0, 0)),     # resident weights
            pl.BlockSpec((1, h_pad), lambda i: (0, 0)),
            pl.BlockSpec((d_out_pad, h_pad), lambda i: (0, 0)),
            pl.BlockSpec((1, d_out_pad), lambda i: (0, 0)),
        ],
        out_specs=pl.BlockSpec((tm, d_out_pad), lambda i: (i, 0)),
        compiler_params=pltpu.CompilerParams(
            dimension_semantics=("parallel",),
            vmem_limit_bytes=32 * 1024 * 1024,
        ),
        cost_estimate=cost,
    )(x_flat, w1_bf, b1_2d, w2_bf, b2_2d)

    # Slice off the padded out_features lanes (batch rows are already exact: the
    # partial boundary block's out-of-bounds writes are masked by Pallas).
    return out[:, :d_out]


def _reference_forward_f32(x_nchw, w1, b1, w2, b2):
    """Pure-JAX f32 reference matching the PyTorch Sequential forward."""
    x = x_nchw.reshape(x_nchw.shape[0], -1)
    x = x @ w1.T + b1
    x = jnp.maximum(x, 0.0)
    return x @ w2.T + b2


def _reference_forward_bf16(x_nchw, w1, b1, w2, b2):
    """Reference with the same bf16-operand / f32-accumulate numerics as the kernel."""
    x = x_nchw.reshape(x_nchw.shape[0], -1).astype(jnp.bfloat16)
    h = lax.dot_general(
        x, w1.astype(jnp.bfloat16),
        dimension_numbers=(((1,), (1,)), ((), ())),
        preferred_element_type=jnp.float32,
    ) + b1
    h = jnp.maximum(h, 0.0)
    y = lax.dot_general(
        h.astype(jnp.bfloat16), w2.astype(jnp.bfloat16),
        dimension_numbers=(((1,), (1,)), ((), ())),
        preferred_element_type=jnp.float32,
    ) + b2
    return y


if __name__ == "__main__":
    key = jax.random.PRNGKey(0)
    k_x, k_w1, k_b1, k_w2, k_b2, k_x2, k_x3 = jax.random.split(key, 7)

    # Small shapes consistent with the module: NCHW input, MLP head.
    N, C, H, W = 2, 4, 16, 16          # -> D_in = 1024
    D_IN = C * H * W
    HIDDEN = 64
    D_OUT = 16

    x = jax.random.normal(k_x, (N, C, H, W), dtype=jnp.float32)

    # Deterministic parameter init (torch.nn.Linear-style uniform bounds).
    bound1 = 1.0 / (D_IN ** 0.5)
    w1 = jax.random.uniform(k_w1, (HIDDEN, D_IN), jnp.float32, -bound1, bound1)
    b1 = jax.random.uniform(k_b1, (HIDDEN,), jnp.float32, -bound1, bound1)
    bound2 = 1.0 / (HIDDEN ** 0.5)
    w2 = jax.random.uniform(k_w2, (D_OUT, HIDDEN), jnp.float32, -bound2, bound2)
    b2 = jax.random.uniform(k_b2, (D_OUT,), jnp.float32, -bound2, bound2)

    # Small batch (matches the module's tiny-shape test).
    out = jax.block_until_ready(sequential_forward(x, w1, b1, w2, b2))
    assert out.shape == (N, D_OUT), out.shape
    ref_bf16 = _reference_forward_bf16(x, w1, b1, w2, b2)
    ref_f32 = _reference_forward_f32(x, w1, b1, w2, b2)
    assert jnp.allclose(out, ref_bf16, atol=2e-3, rtol=2e-3), "mismatch vs bf16 reference"
    assert jnp.allclose(out, ref_f32, atol=5e-2, rtol=5e-2), "mismatch vs f32 reference"

    # Ragged batch: exercises the partial boundary block (no host-side pad of x).
    N_RAGGED = 100
    x2 = jax.random.normal(k_x2, (N_RAGGED, C, H, W), dtype=jnp.float32)
    out2 = jax.block_until_ready(sequential_forward(x2, w1, b1, w2, b2))
    assert out2.shape == (N_RAGGED, D_OUT), out2.shape
    ref2 = _reference_forward_bf16(x2, w1, b1, w2, b2)
    assert jnp.allclose(out2, ref2, atol=2e-3, rtol=2e-3), "mismatch (ragged batch)"

    # Larger batch: exercises the multi-step parallel batch grid + deeper x buffering.
    N_BIG = 4096
    x3 = jax.random.normal(k_x3, (N_BIG, C, H, W), dtype=jnp.float32)
    out3 = jax.block_until_ready(sequential_forward(x3, w1, b1, w2, b2))
    assert out3.shape == (N_BIG, D_OUT), out3.shape
    ref3 = _reference_forward_bf16(x3, w1, b1, w2, b2)
    assert jnp.allclose(out3, ref3, atol=2e-3, rtol=2e-3), "mismatch (big batch)"

    print("KERNEL_OK")
</pallas_src>

<mosaic_0001>
module attributes {stable_mosaic.version = 11 : i64} {
  func.func @_sequential_mlp_kernel(%arg0: i32, %arg1: memref<2x1024xf32, #tpu.memory_space<vmem>>, %arg2: memref<128x1024xbf16, #tpu.memory_space<vmem>>, %arg3: memref<1x128xf32, #tpu.memory_space<vmem>>, %arg4: memref<128x128xbf16, #tpu.memory_space<vmem>>, %arg5: memref<1x128xf32, #tpu.memory_space<vmem>>, %arg6: memref<2x128xf32, #tpu.memory_space<vmem>>) attributes {dimension_semantics = [#tpu.dimension_semantics<parallel>], iteration_bounds = array<i64: 1>, scalar_prefetch = 0 : i64, scratch_operands = 0 : i64, tpu.core_type = #tpu.core_type<tc>, window_params = [{transform_indices = @transform_0, window_bounds = array<i64: 2, 1024>}, {pipeline_mode = #tpu.pipeline_mode<synchronous>, transform_indices = @transform_1, window_bounds = array<i64: 128, 1024>}, {pipeline_mode = #tpu.pipeline_mode<synchronous>, transform_indices = @transform_2, window_bounds = array<i64: 1, 128>}, {pipeline_mode = #tpu.pipeline_mode<synchronous>, transform_indices = @transform_3, window_bounds = array<i64: 128, 128>}, {pipeline_mode = #tpu.pipeline_mode<synchronous>, transform_indices = @transform_4, window_bounds = array<i64: 1, 128>}, {transform_indices = @transform_5, window_bounds = array<i64: 2, 128>}]} {
    %c0 = arith.constant 0 : index
    %c0_0 = arith.constant 0 : index
    %0 = vector.load %arg1[%c0, %c0_0] : memref<2x1024xf32, #tpu.memory_space<vmem>>, vector<2x1024xf32>
    %1 = arith.truncf %0 : vector<2x1024xf32> to vector<2x1024xbf16>
    %c0_1 = arith.constant 0 : index
    %c0_2 = arith.constant 0 : index
    %2 = vector.load %arg2[%c0_1, %c0_2] : memref<128x1024xbf16, #tpu.memory_space<vmem>>, vector<128x1024xbf16>
    %cst = arith.constant dense<0.000000e+00> : vector<2x128xf32>
    %3 = tpu.matmul %1, %2, %cst {dimension_numbers = #tpu.dot_dimension_numbers<[1], [1], [0], [0], [0, 0, 1, 0], [], []>} : vector<2x1024xbf16>, vector<128x1024xbf16>, vector<2x128xf32> -> vector<2x128xf32>
    %c0_3 = arith.constant 0 : index
    %c0_4 = arith.constant 0 : index
    %4 = vector.load %arg3[%c0_3, %c0_4] : memref<1x128xf32, #tpu.memory_space<vmem>>, vector<1x128xf32>
    %5 = vector.broadcast %4 : vector<1x128xf32> to vector<2x128xf32>
    %6 = arith.addf %3, %5 : vector<2x128xf32>
    %cst_5 = arith.constant 0.000000e+00 : f32
    %7 = vector.broadcast %cst_5 : f32 to vector<2x128xf32>
    %8 = arith.maximumf %6, %7 : vector<2x128xf32>
    %9 = arith.truncf %8 : vector<2x128xf32> to vector<2x128xbf16>
    %c0_6 = arith.constant 0 : index
    %c0_7 = arith.constant 0 : index
    %10 = vector.load %arg4[%c0_6, %c0_7] : memref<128x128xbf16, #tpu.memory_space<vmem>>, vector<128x128xbf16>
    %cst_8 = arith.constant dense<0.000000e+00> : vector<2x128xf32>
    %11 = tpu.matmul %9, %10, %cst_8 {dimension_numbers = #tpu.dot_dimension_numbers<[1], [1], [0], [0], [0, 0, 1, 0], [], []>} : vector<2x128xbf16>, vector<128x128xbf16>, vector<2x128xf32> -> vector<2x128xf32>
    %c0_9 = arith.constant 0 : index
    %c0_10 = arith.constant 0 : index
    %12 = vector.load %arg5[%c0_9, %c0_10] : memref<1x128xf32, #tpu.memory_space<vmem>>, vector<1x128xf32>
    %13 = vector.broadcast %12 : vector<1x128xf32> to vector<2x128xf32>
    %14 = arith.addf %11, %13 : vector<2x128xf32>
    %c0_11 = arith.constant 0 : index
    %c0_12 = arith.constant 0 : index
    %15 = vector.load %arg6[%c0_11, %c0_12] : memref<2x128xf32, #tpu.memory_space<vmem>>, vector<2x128xf32>
    tpu.vector_store %arg6[%c0_11, %c0_12], %14 {strides = array<i32>} : memref<2x128xf32, #tpu.memory_space<vmem>>, vector<2x128xf32>,
    return
  }
  func.func @transform_0(%arg0: i32) -> (i32, i32) {
    %c0_i32 = arith.constant 0 : i32
    %c0_i32_0 = arith.constant 0 : i32
    return %arg0, %c0_i32 : i32, i32
  }
  func.func @transform_1(%arg0: i32) -> (i32, i32) {
    %c0_i32 = arith.constant 0 : i32
    %c0_i32_0 = arith.constant 0 : i32
    %c0_i32_1 = arith.constant 0 : i32
    return %c0_i32, %c0_i32_0 : i32, i32
  }
  func.func @transform_2(%arg0: i32) -> (i32, i32) {
    %c0_i32 = arith.constant 0 : i32
    %c0_i32_0 = arith.constant 0 : i32
    %c0_i32_1 = arith.constant 0 : i32
    return %c0_i32, %c0_i32_0 : i32, i32
  }
  func.func @transform_3(%arg0: i32) -> (i32, i32) {
    %c0_i32 = arith.constant 0 : i32
    %c0_i32_0 = arith.constant 0 : i32
    %c0_i32_1 = arith.constant 0 : i32
    return %c0_i32, %c0_i32_0 : i32, i32
  }
  func.func @transform_4(%arg0: i32) -> (i32, i32) {
    %c0_i32 = arith.constant 0 : i32
    %c0_i32_0 = arith.constant 0 : i32
    %c0_i32_1 = arith.constant 0 : i32
    return %c0_i32, %c0_i32_0 : i32, i32
  }
  func.func @transform_5(%arg0: i32) -> (i32, i32) {
    %c0_i32 = arith.constant 0 : i32
    %c0_i32_0 = arith.constant 0 : i32
    return %arg0, %c0_i32 : i32, i32
  }
}

</mosaic_0001>

<llo_original>
// kernel: tpu_custom_call.1
$region0: #{tpu_custom_call.1}
  #allocation0 [shape = 'u32[]', space=smem, size = 0x4, offset = 0x4, fixed_abs, tag = 'smem constant byte address 0x4 - core index']
  #allocation1 [shape = 'u32[144,128]{1,0:T(1,128)}', space=vmem, size = 0x12000, scoped, tag = 'internal scratch']
  %s0 = inlined_call_operand.hbm [shape: f32[2,1024], index: 0, kind: input, shape index: {}]
  %s1 = inlined_call_operand.hbm [shape: bf16[128,1024], index: 1, kind: input, shape index: {}]
  %s2 = inlined_call_operand.vmem [shape: f32[1,128], index: 2, kind: input, shape index: {}]
  %s3 = inlined_call_operand.hbm [shape: bf16[128,128], index: 3, kind: input, shape index: {}]
  %s4 = inlined_call_operand.vmem [shape: f32[1,128], index: 4, kind: input, shape index: {}]
  %s5 = inlined_call_operand.hbm [shape: f32[2,128], index: 5, kind: output, shape index: {}]
  %s6 = sld [smem:[#allocation0]]
  $region42: #{tpu_custom_call.1} parent=0
    _
  %s8 = ssub.s32 1, %s6
  %s9 = scalar_select 0, %s8, %s6
  $region1: #{tpu_custom_call.1} parent=0
    #allocation2 [shape = 'u8[8192]{0}', space=vmem, size = 0x2000, scoped, tag = 'input window, operand 0, single buffered']
    #allocation3 [shape = 's32[1]{0}', space=sflag, size = 0x4, scoped, tag = 'scoped memory for tpu_custom_call.1']
    #allocation4 [shape = 's32[1]{0}', space=sflag, size = 0x4, scoped, tag = 'scoped memory for tpu_custom_call.1']
    #allocation5 [shape = 'u8[262144]{0}', space=vmem, size = 0x40000, scoped, tag = 'input window, operand 1, single buffered']
    #allocation6 [shape = 's32[1]{0}', space=sflag, size = 0x4, scoped, tag = 'scoped memory for tpu_custom_call.1']
    #allocation7 [shape = 'u8[32768]{0}', space=vmem, size = 0x8000, scoped, tag = 'input window, operand 3, single buffered']
    #allocation8 [shape = 'u8[1024]{0}', space=vmem, size = 0x400, scoped, tag = 'output window, operand 0, single buffered']
    %10 = vsyncpa [#allocation3], 0
    %11 = vsyncpa [#allocation6], 0
    %12 = vsyncpa [#allocation4], 0
    // Predicated region
    $region2: #{tpu_custom_call.1} parent=1 // pred_check
      _
    $region3: #{tpu_custom_call.1} parent=1 // pred_check_branch
      %14 = sbr.rel (0) target = $region5
    $region4: #{tpu_custom_call.1} parent=1 // pred_region
      %s16 = ssub.s32 256, 256
      %17 = vsyncadd [#allocation3], %s16
      %s19 = sshll.u32 [#allocation2], 4
      %s20 = int_to_ptr.vmem [resolvable:$true] %s19
      %22 = dma.hbm_to_vmem [thread:$0]  %s0, 256, %s20, [#allocation3]
    $region5: #{tpu_custom_call.1} parent=1 // pred_fallthru
      _
    // Predicated region
    $region6: #{tpu_custom_call.1} parent=1 // pred_check
      _
    $region7: #{tpu_custom_call.1} parent=1 // pred_check_branch
      %24 = sbr.rel (0) target = $region9
    $region8: #{tpu_custom_call.1} parent=1 // pred_region
      %s26 = ssub.s32 8192, 8192
      %27 = vsyncadd [#allocation6], %s26
      %s28 = sshll.u32 [#allocation5], 4
      %s29 = int_to_ptr.vmem [resolvable:$true] %s28
      %34 = dma.hbm_to_vmem [thread:$0]  %s1, 8192, %s29, [#allocation6], 512, 512, 32
    $region9: #{tpu_custom_call.1} parent=1 // pred_fallthru
      _
    // Predicated region
    $region10: #{tpu_custom_call.1} parent=1 // pred_check
      _
    $region11: #{tpu_custom_call.1} parent=1 // pred_check_branch
      %36 = sbr.rel (0) target = $region13
    $region12: #{tpu_custom_call.1} parent=1 // pred_region
      _
    $region13: #{tpu_custom_call.1} parent=1 // pred_fallthru
      _
    // Predicated region
    $region14: #{tpu_custom_call.1} parent=1 // pred_check
      _
    $region15: #{tpu_custom_call.1} parent=1 // pred_check_branch
      %38 = sbr.rel (0) target = $region17
    $region16: #{tpu_custom_call.1} parent=1 // pred_region
      %s40 = ssub.s32 1024, 1024
      %41 = vsyncadd [#allocation6], %s40
      %s42 = sshll.u32 [#allocation7], 4
      %s43 = int_to_ptr.vmem [resolvable:$true] %s42
      %48 = dma.hbm_to_vmem [thread:$0]  %s3, 1024, %s43, [#allocation6], 64, 64, 4
    $region17: #{tpu_custom_call.1} parent=1 // pred_fallthru
      _
    // Predicated region
    $region18: #{tpu_custom_call.1} parent=1 // pred_check
      _
    $region19: #{tpu_custom_call.1} parent=1 // pred_check_branch
      %50 = sbr.rel (0) target = $region21
    $region20: #{tpu_custom_call.1} parent=1 // pred_region
      _
    $region21: #{tpu_custom_call.1} parent=1 // pred_fallthru
      _
    // Predicated region
    $region22: #{tpu_custom_call.1} parent=1 // pred_check
      _
    $region23: #{tpu_custom_call.1} parent=1 // pred_check_branch
      %52 = sbr.rel (0) target = $region25
    $region24: #{tpu_custom_call.1} parent=1 // pred_region
      %53 = dma.done [#allocation3], 256
    $region25: #{tpu_custom_call.1} parent=1 // pred_fallthru
      _
    // Predicated region
    $region26: #{tpu_custom_call.1} parent=1 // pred_check
      _
    $region27: #{tpu_custom_call.1} parent=1 // pred_check_branch
      %55 = sbr.rel (0) target = $region29
    $region28: #{tpu_custom_call.1} parent=1 // pred_region
      %56 = dma.done [#allocation6], 8192
    $region29: #{tpu_custom_call.1} parent=1 // pred_fallthru
      _
    // Predicated region
    $region30: #{tpu_custom_call.1} parent=1 // pred_check
      _
    $region31: #{tpu_custom_call.1} parent=1 // pred_check_branch
      %58 = sbr.rel (0) target = $region33
    $region32: #{tpu_custom_call.1} parent=1 // pred_region
      %59 = dma.done [#allocation6], 1024
    $region33: #{tpu_custom_call.1} parent=1 // pred_fallthru
      _
    %v61 = vld [vmem:[#allocation2] sm:$0xff]
    %v62 = vld [vmem:[#allocation2 + $0x8] sm:$0xff]
    %v65 = vcombine.high %v61, %v61
    %v67 = vunpack.c.l.s4 1983009808
    %v68 = vunpack.c.0.s8 %v67
    %v69 = vlaneseq
    %v70 = vshrl.u32 %v69, 7
    %v71 = vsub.s32 %v68, %v70
    %v72 = vrot.slane %v61, %v71
    %v74 = vunpack.c.l.s4 1983009808
    %v75 = vunpack.c.0.s8 %v74
    %v76 = vlaneseq
    %v77 = vshrl.u32 %v76, 7
    %v78 = vsub.s32 %v75, %v77
    %v79 = vrot.slane %v65, %v78
    %v80 = vcombine.high %v72, %v72
    %v81 = vcombine.high %v79, %v79
    %v82 = vcombine.high %v62, %v62
    %v84 = vunpack.c.l.s4 1983009808
    %v85 = vunpack.c.0.s8 %v84
    %v86 = vlaneseq
    %v87 = vshrl.u32 %v86, 7
    %v88 = vsub.s32 %v85, %v87
    %v89 = vrot.slane %v62, %v88
    %v91 = vunpack.c.l.s4 1983009808
    %v92 = vunpack.c.0.s8 %v91
    %v93 = vlaneseq
    %v94 = vshrl.u32 %v93, 7
    %v95 = vsub.s32 %v92, %v94
    %v96 = vrot.slane %v82, %v95
    %v97 = vcombine.high %v89, %v89
    %v98 = vcombine.high %v96, %v96
    %v107 = vpack.c.bf16 %v72, %v72
    %v108 = vpack.c.bf16 %v80, %v80
    %v109 = vpack.c.bf16 %v79, %v79
    %v110 = vpack.c.bf16 %v81, %v81
    %v111 = vpack.c.bf16 %v89, %v89
    %v112 = vpack.c.bf16 %v97, %v97
    %v113 = vpack.c.bf16 %v96, %v96
    %v114 = vpack.c.bf16 %v98, %v98
    %v115 = vld [vmem:[#allocation5] sm:$0xff]
    %v116 = vld [vmem:[#allocation5 + $0x8] sm:$0xff]
    %v117 = vld [vmem:[#allocation5 + $0x10] sm:$0xff]
    %v118 = vld [vmem:[#allocation5 + $0x18] sm:$0xff]
    %v119 = vld [vmem:[#allocation5 + $0x20] sm:$0xff]
    %v120 = vld [vmem:[#allocation5 + $0x28] sm:$0xff]
    %v121 = vld [vmem:[#allocation5 + $0x30] sm:$0xff]
    %v122 = vld [vmem:[#allocation5 + $0x38] sm:$0xff]
    %v123 = vld [vmem:[#allocation5 + $0x40] sm:$0xff]
    %v124 = vld [vmem:[#allocation5 + $0x48] sm:$0xff]
    %v125 = vld [vmem:[#allocation5 + $0x50] sm:$0xff]
    %v126 = vld [vmem:[#allocation5 + $0x58] sm:$0xff]
    %v127 = vld [vmem:[#allocation5 + $0x60] sm:$0xff]
    %v128 = vld [vmem:[#allocation5 + $0x68] sm:$0xff]
    %v129 = vld [vmem:[#allocation5 + $0x70] sm:$0xff]
    %v130 = vld [vmem:[#allocation5 + $0x78] sm:$0xff]
    %v131 = vld [vmem:[#allocation5 + $0x80] sm:$0xff]
    %v132 = vld [vmem:[#allocation5 + $0x88] sm:$0xff]
    %v133 = vld [vmem:[#allocation5 + $0x90] sm:$0xff]
    %v134 = vld [vmem:[#allocation5 + $0x98] sm:$0xff]
    %v135 = vld [vmem:[#allocation5 + $0xa0] sm:$0xff]
    %v136 = vld [vmem:[#allocation5 + $0xa8] sm:$0xff]
    %v137 = vld [vmem:[#allocation5 + $0xb0] sm:$0xff]
    %v138 = vld [vmem:[#allocation5 + $0xb8] sm:$0xff]
    %v139 = vld [vmem:[#allocation5 + $0xc0] sm:$0xff]
    %v140 = vld [vmem:[#allocation5 + $0xc8] sm:$0xff]
    %v141 = vld [vmem:[#allocation5 + $0xd0] sm:$0xff]
    %v142 = vld [vmem:[#allocation5 + $0xd8] sm:$0xff]
    %v143 = vld [vmem:[#allocation5 + $0xe0] sm:$0xff]
    %v144 = vld [vmem:[#allocation5 + $0xe8] sm:$0xff]
    %v145 = vld [vmem:[#allocation5 + $0xf0] sm:$0xff]
    %v146 = vld [vmem:[#allocation5 + $0xf8] sm:$0xff]
    %v147 = vld [vmem:[#allocation5 + $0x100] sm:$0xff]
    %v148 = vld [vmem:[#allocation5 + $0x108] sm:$0xff]
    %v149 = vld [vmem:[#allocation5 + $0x110] sm:$0xff]
    %v150 = vld [vmem:[#allocation5 + $0x118] sm:$0xff]
    %v151 = vld [vmem:[#allocation5 + $0x120] sm:$0xff]
    %v152 = vld [vmem:[#allocation5 + $0x128] sm:$0xff]
    %v153 = vld [vmem:[#allocation5 + $0x130] sm:$0xff]
    %v154 = vld [vmem:[#allocation5 + $0x138] sm:$0xff]
    %v155 = vld [vmem:[#allocation5 + $0x140] sm:$0xff]
    %v156 = vld [vmem:[#allocation5 + $0x148] sm:$0xff]
    %v157 = vld [vmem:[#allocation5 + $0x150] sm:$0xff]
    %v158 = vld [vmem:[#allocation5 + $0x158] sm:$0xff]
    %v159 = vld [vmem:[#allocation5 + $0x160] sm:$0xff]
    %v160 = vld [vmem:[#allocation5 + $0x168] sm:$0xff]
    %v161 = vld [vmem:[#allocation5 + $0x170] sm:$0xff]
    %v162 = vld [vmem:[#allocation5 + $0x178] sm:$0xff]
    %v163 = vld [vmem:[#allocation5 + $0x180] sm:$0xff]
    %v164 = vld [vmem:[#allocation5 + $0x188] sm:$0xff]
    %v165 = vld [vmem:[#allocation5 + $0x190] sm:$0xff]
    %v166 = vld [vmem:[#allocation5 + $0x198] sm:$0xff]
    %v167 = vld [vmem:[#allocation5 + $0x1a0] sm:$0xff]
    %v168 = vld [vmem:[#allocation5 + $0x1a8] sm:$0xff]
    %v169 = vld [vmem:[#allocation5 + $0x1b0] sm:$0xff]
    %v170 = vld [vmem:[#allocation5 + $0x1b8] sm:$0xff]
    %v171 = vld [vmem:[#allocation5 + $0x1c0] sm:$0xff]
    %v172 = vld [vmem:[#allocation5 + $0x1c8] sm:$0xff]
    %v173 = vld [vmem:[#allocation5 + $0x1d0] sm:$0xff]
    %v174 = vld [vmem:[#allocation5 + $0x1d8] sm:$0xff]
    %v175 = vld [vmem:[#allocation5 + $0x1e0] sm:$0xff]
    %v176 = vld [vmem:[#allocation5 + $0x1e8] sm:$0xff]
    %v177 = vld [vmem:[#allocation5 + $0x1f0] sm:$0xff]
    %v178 = vld [vmem:[#allocation5 + $0x1f8] sm:$0xff]
    %v179 = vld [vmem:[%s2] sm:$0x1]
    %v181 = vlaneseq
    %v182 = vshrl.u32 %v181, 7
    %v183 = vsub.s32 0, %v182
    %v184 = vrot.slane %v179, %v183
    %v250 = vunpack.c.l.b16 %v115
    %v251 = vunpack.c.h.b16 %v115
    %v252 = vunpack.c.l.b16 %v116
    %v253 = vunpack.c.h.b16 %v116
    %v254 = vunpack.c.l.b16 %v117
    %v255 = vunpack.c.h.b16 %v117
    %v256 = vunpack.c.l.b16 %v118
    %v257 = vunpack.c.h.b16 %v118
    %v258 = vunpack.c.l.b16 %v119
    %v259 = vunpack.c.h.b16 %v119
    %v260 = vunpack.c.l.b16 %v120
    %v261 = vunpack.c.h.b16 %v120
    %v262 = vunpack.c.l.b16 %v121
    %v263 = vunpack.c.h.b16 %v121
    %v264 = vunpack.c.l.b16 %v122
    %v265 = vunpack.c.h.b16 %v122
    %v266 = vunpack.c.l.b16 %v123
    %v267 = vunpack.c.h.b16 %v123
    %v268 = vunpack.c.l.b16 %v124
    %v269 = vunpack.c.h.b16 %v124
    %v270 = vunpack.c.l.b16 %v125
    %v271 = vunpack.c.h.b16 %v125
    %v272 = vunpack.c.l.b16 %v126
    %v273 = vunpack.c.h.b16 %v126
    %v274 = vunpack.c.l.b16 %v127
    %v275 = vunpack.c.h.b16 %v127
    %v276 = vunpack.c.l.b16 %v128
    %v277 = vunpack.c.h.b16 %v128
    %v278 = vunpack.c.l.b16 %v129
    %v279 = vunpack.c.h.b16 %v129
    %v280 = vunpack.c.l.b16 %v130
    %v281 = vunpack.c.h.b16 %v130
    %v282 = vunpack.c.l.b16 %v131
    %v283 = vunpack.c.h.b16 %v131
    %v284 = vunpack.c.l.b16 %v132
    %v285 = vunpack.c.h.b16 %v132
    %v286 = vunpack.c.l.b16 %v133
    %v287 = vunpack.c.h.b16 %v133
    %v288 = vunpack.c.l.b16 %v134
    %v289 = vunpack.c.h.b16 %v134
    %v290 = vunpack.c.l.b16 %v135
    %v291 = vunpack.c.h.b16 %v135
    %v292 = vunpack.c.l.b16 %v136
    %v293 = vunpack.c.h.b16 %v136
    %v294 = vunpack.c.l.b16 %v137
    %v295 = vunpack.c.h.b16 %v137
    %v296 = vunpack.c.l.b16 %v138
    %v297 = vunpack.c.h.b16 %v138
    %v298 = vunpack.c.l.b16 %v139
    %v299 = vunpack.c.h.b16 %v139
    %v300 = vunpack.c.l.b16 %v140
    %v301 = vunpack.c.h.b16 %v140
    %v302 = vunpack.c.l.b16 %v141
    %v303 = vunpack.c.h.b16 %v141
    %v304 = vunpack.c.l.b16 %v142
    %v305 = vunpack.c.h.b16 %v142
    %v306 = vunpack.c.l.b16 %v143
    %v307 = vunpack.c.h.b16 %v143
    %v308 = vunpack.c.l.b16 %v144
    %v309 = vunpack.c.h.b16 %v144
    %v310 = vunpack.c.l.b16 %v145
    %v311 = vunpack.c.h.b16 %v145
    %v312 = vunpack.c.l.b16 %v146
    %v313 = vunpack.c.h.b16 %v146
    %v314 = vunpack.c.l.b16 %v147
    %v315 = vunpack.c.h.b16 %v147
    %v316 = vunpack.c.l.b16 %v148
    %v317 = vunpack.c.h.b16 %v148
    %v318 = vunpack.c.l.b16 %v149
    %v319 = vunpack.c.h.b16 %v149
    %v320 = vunpack.c.l.b16 %v150
    %v321 = vunpack.c.h.b16 %v150
    %v322 = vunpack.c.l.b16 %v151
    %v323 = vunpack.c.h.b16 %v151
    %v324 = vunpack.c.l.b16 %v152
    %v325 = vunpack.c.h.b16 %v152
    %v326 = vunpack.c.l.b16 %v153
    %v327 = vunpack.c.h.b16 %v153
    %v328 = vunpack.c.l.b16 %v154
    %v329 = vunpack.c.h.b16 %v154
    %v330 = vunpack.c.l.b16 %v155
    %v331 = vunpack.c.h.b16 %v155
    %v332 = vunpack.c.l.b16 %v156
    %v333 = vunpack.c.h.b16 %v156
    %v334 = vunpack.c.l.b16 %v157
    %v335 = vunpack.c.h.b16 %v157
    %v336 = vunpack.c.l.b16 %v158
    %v337 = vunpack.c.h.b16 %v158
    %v338 = vunpack.c.l.b16 %v159
    %v339 = vunpack.c.h.b16 %v159
    %v340 = vunpack.c.l.b16 %v160
    %v341 = vunpack.c.h.b16 %v160
    %v342 = vunpack.c.l.b16 %v161
    %v343 = vunpack.c.h.b16 %v161
    %v344 = vunpack.c.l.b16 %v162
    %v345 = vunpack.c.h.b16 %v162
    %v346 = vunpack.c.l.b16 %v163
    %v347 = vunpack.c.h.b16 %v163
    %v348 = vunpack.c.l.b16 %v164
    %v349 = vunpack.c.h.b16 %v164
    %v350 = vunpack.c.l.b16 %v165
    %v351 = vunpack.c.h.b16 %v165
    %v352 = vunpack.c.l.b16 %v166
    %v353 = vunpack.c.h.b16 %v166
    %v354 = vunpack.c.l.b16 %v167
    %v355 = vunpack.c.h.b16 %v167
    %v356 = vunpack.c.l.b16 %v168
    %v357 = vunpack.c.h.b16 %v168
    %v358 = vunpack.c.l.b16 %v169
    %v359 = vunpack.c.h.b16 %v169
    %v360 = vunpack.c.l.b16 %v170
    %v361 = vunpack.c.h.b16 %v170
    %v362 = vunpack.c.l.b16 %v171
    %v363 = vunpack.c.h.b16 %v171
    %v364 = vunpack.c.l.b16 %v172
    %v365 = vunpack.c.h.b16 %v172
    %v366 = vunpack.c.l.b16 %v173
    %v367 = vunpack.c.h.b16 %v173
    %v368 = vunpack.c.l.b16 %v174
    %v369 = vunpack.c.h.b16 %v174
    %v370 = vunpack.c.l.b16 %v175
    %v371 = vunpack.c.h.b16 %v175
    %v372 = vunpack.c.l.b16 %v176
    %v373 = vunpack.c.h.b16 %v176
    %v374 = vunpack.c.l.b16 %v177
    %v375 = vunpack.c.h.b16 %v177
    %v376 = vunpack.c.l.b16 %v178
    %v377 = vunpack.c.h.b16 %v178
    %v378 = vpack.c.b16 %v258, %v250
    %v379 = vpack.c.b16 %v259, %v251
    %v380 = vpack.c.b16 %v260, %v252
    %v381 = vpack.c.b16 %v261, %v253
    %v382 = vpack.c.b16 %v262, %v254
    %v383 = vpack.c.b16 %v263, %v255
    %v384 = vpack.c.b16 %v264, %v256
    %v385 = vpack.c.b16 %v265, %v257
    %v386 = vpack.c.b16 %v274, %v266
    %v387 = vpack.c.b16 %v275, %v267
    %v388 = vpack.c.b16 %v276, %v268
    %v389 = vpack.c.b16 %v277, %v269
    %v390 = vpack.c.b16 %v278, %v270
    %v391 = vpack.c.b16 %v279, %v271
    %v392 = vpack.c.b16 %v280, %v272
    %v393 = vpack.c.b16 %v281, %v273
    %v394 = vpack.c.b16 %v290, %v282
    %v395 = vpack.c.b16 %v291, %v283
    %v396 = vpack.c.b16 %v292, %v284
    %v397 = vpack.c.b16 %v293, %v285
    %v398 = vpack.c.b16 %v294, %v286
    %v399 = vpack.c.b16 %v295, %v287
    %v400 = vpack.c.b16 %v296, %v288
    %v401 = vpack.c.b16 %v297, %v289
    %v402 = vpack.c.b16 %v306, %v298
    %v403 = vpack.c.b16 %v307, %v299
    %v404 = vpack.c.b16 %v308, %v300
    %v405 = vpack.c.b16 %v309, %v301
    %v406 = vpack.c.b16 %v310, %v302
    %v407 = vpack.c.b16 %v311, %v303
    %v408 = vpack.c.b16 %v312, %v304
    %v409 = vpack.c.b16 %v313, %v305
    %v410 = vpack.c.b16 %v322, %v314
    %v411 = vpack.c.b16 %v323, %v315
    %v412 = vpack.c.b16 %v324, %v316
    %v413 = vpack.c.b16 %v325, %v317
    %v414 = vpack.c.b16 %v326, %v318
    %v415 = vpack.c.b16 %v327, %v319
    %v416 = vpack.c.b16 %v328, %v320
    %v417 = vpack.c.b16 %v329, %v321
    %v418 = vpack.c.b16 %v338, %v330
    %v419 = vpack.c.b16 %v339, %v331
    %v420 = vpack.c.b16 %v340, %v332
    %v421 = vpack.c.b16 %v341, %v333
    %v422 = vpack.c.b16 %v342, %v334
    %v423 = vpack.c.b16 %v343, %v335
    %v424 = vpack.c.b16 %v344, %v336
    %v425 = vpack.c.b16 %v345, %v337
    %v426 = vpack.c.b16 %v354, %v346
    %v427 = vpack.c.b16 %v355, %v347
    %v428 = vpack.c.b16 %v356, %v348
    %v429 = vpack.c.b16 %v357, %v349
    %v430 = vpack.c.b16 %v358, %v350
    %v431 = vpack.c.b16 %v359, %v351
    %v432 = vpack.c.b16 %v360, %v352
    %v433 = vpack.c.b16 %v361, %v353
    %v434 = vpack.c.b16 %v370, %v362
    %v435 = vpack.c.b16 %v371, %v363
    %v436 = vpack.c.b16 %v372, %v364
    %v437 = vpack.c.b16 %v373, %v365
    %v438 = vpack.c.b16 %v374, %v366
    %v439 = vpack.c.b16 %v375, %v367
    %v440 = vpack.c.b16 %v376, %v368
    %v441 = vpack.c.b16 %v377, %v369
    %506 = vmatprep.subr.bf16.mxu0 %v379
    %507 = vmatpush1.bf16.xpose.msra.mxu0 %v378
    %508 = vmatprep.subr.bf16.mxu0 %v387
    %509 = vmatpush1.bf16.xpose.msra.mxu0 %v386
    %510 = vmatprep.subr.bf16.mxu0 %v395
    %511 = vmatpush1.bf16.xpose.msra.mxu0 %v394
    %512 = vmatprep.subr.bf16.mxu0 %v403
    %513 = vmatpush1.bf16.xpose.msra.mxu0 %v402
    %514 = vmatprep.subr.bf16.mxu0 %v411
    %515 = vmatpush1.bf16.xpose.msra.mxu0 %v410
    %516 = vmatprep.subr.bf16.mxu0 %v419
    %517 = vmatpush1.bf16.xpose.msra.mxu0 %v418
    %518 = vmatprep.subr.bf16.mxu0 %v427
    %519 = vmatpush1.bf16.xpose.msra.mxu0 %v426
    %520 = vmatprep.subr.bf16.mxu0 %v435
    %521 = vmatpush1.bf16.xpose.msra.mxu0 %v434
    %522 = vmatprep.subr.bf16.mxu0 0
    %523 = vmatpush1.bf16.xpose.msra.mxu0 0
    %524 = vmatprep.subr.bf16.mxu0 0
    %525 = vmatpush1.bf16.xpose.msra.mxu0 0
    %526 = vmatprep.subr.bf16.mxu0 0
    %527 = vmatpush1.bf16.xpose.msra.mxu0 0
    %528 = vmatprep.subr.bf16.mxu0 0
    %529 = vmatpush1.bf16.xpose.msra.mxu0 0
    %530 = vmatprep.subr.bf16.mxu0 0
    %531 = vmatpush1.bf16.xpose.msra.mxu0 0
    %532 = vmatprep.subr.bf16.mxu0 0
    %533 = vmatpush1.bf16.xpose.msra.mxu0 0
    %534 = vmatprep.subr.bf16.mxu0 0
    %535 = vmatpush1.bf16.xpose.msra.mxu0 0
    %536 = vmatprep.subr.bf16.mxu0 0
    %537 = vmatpush1.bf16.xpose.msra.mxu0 0
    %538 = vmatprep.mubr.bf16.mxu0 %v108
    %539 = vmatmul.mubr.bf16.gmra.mrb[0].mxu0 %v107
    %v540 = vpop.f32.mrb[0].mxu0
    %v541 = vadd.f32 %v184, %v540
    %v542 = vpop.f32.mrb[0].mxu0
    %v543 = vpop.f32.mrb[0].mxu0
    %v544 = vpop.f32.mrb[0].mxu0
    %545 = vdwg.mxu0
    %546 = vmatprep.subr.bf16.mxu0 %v381
    %547 = vmatpush1.bf16.xpose.msra.mxu0 %v380
    %548 = vmatprep.subr.bf16.mxu0 %v389
    %549 = vmatpush1.bf16.xpose.msra.mxu0 %v388
    %550 = vmatprep.subr.bf16.mxu0 %v397
    %551 = vmatpush1.bf16.xpose.msra.mxu0 %v396
    %552 = vmatprep.subr.bf16.mxu0 %v405
    %553 = vmatpush1.bf16.xpose.msra.mxu0 %v404
    %554 = vmatprep.subr.bf16.mxu0 %v413
    %555 = vmatpush1.bf16.xpose.msra.mxu0 %v412
    %556 = vmatprep.subr.bf16.mxu0 %v421
    %557 = vmatpush1.bf16.xpose.msra.mxu0 %v420
    %558 = vmatprep.subr.bf16.mxu0 %v429
    %559 = vmatpush1.bf16.xpose.msra.mxu0 %v428
    %560 = vmatprep.subr.bf16.mxu0 %v437
    %561 = vmatpush1.bf16.xpose.msra.mxu0 %v436
    %562 = vmatprep.subr.bf16.mxu0 0
    %563 = vmatpush1.bf16.xpose.msra.mxu0 0
    %564 = vmatprep.subr.bf16.mxu0 0
    %565 = vmatpush1.bf16.xpose.msra.mxu0 0
    %566 = vmatprep.subr.bf16.mxu0 0
    %567 = vmatpush1.bf16.xpose.msra.mxu0 0
    %568 = vmatprep.subr.bf16.mxu0 0
    %569 = vmatpush1.bf16.xpose.msra.mxu0 0
    %570 = vmatprep.subr.bf16.mxu0 0
    %571 = vmatpush1.bf16.xpose.msra.mxu0 0
    %572 = vmatprep.subr.bf16.mxu0 0
    %573 = vmatpush1.bf16.xpose.msra.mxu0 0
    %574 = vmatprep.subr.bf16.mxu0 0
    %575 = vmatpush1.bf16.xpose.msra.mxu0 0
    %576 = vmatprep.subr.bf16.mxu0 0
    %577 = vmatpush1.bf16.xpose.msra.mxu0 0
    %578 = vmatprep.mubr.bf16.mxu0 %v110
    %579 = vmatmul.mubr.bf16.gmra.mrb[0].mxu0 %v109
    %v580 = vpop.f32.mrb[0].mxu0
    %v581 = vadd.f32 %v541, %v580
    %v582 = vpop.f32.mrb[0].mxu0
    %v583 = vpop.f32.mrb[0].mxu0
    %v584 = vpop.f32.mrb[0].mxu0
    %585 = vdwg.mxu0
    %586 = vmatprep.subr.bf16.mxu0 %v383
    %587 = vmatpush1.bf16.xpose.msra.mxu0 %v382
    %588 = vmatprep.subr.bf16.mxu0 %v391
    %589 = vmatpush1.bf16.xpose.msra.mxu0 %v390
    %590 = vmatprep.subr.bf16.mxu0 %v399
    %591 = vmatpush1.bf16.xpose.msra.mxu0 %v398
    %592 = vmatprep.subr.bf16.mxu0 %v407
    %593 = vmatpush1.bf16.xpose.msra.mxu0 %v406
    %594 = vmatprep.subr.bf16.mxu0 %v415
    %595 = vmatpush1.bf16.xpose.msra.mxu0 %v414
    %596 = vmatprep.subr.bf16.mxu0 %v423
    %597 = vmatpush1.bf16.xpose.msra.mxu0 %v422
    %598 = vmatprep.subr.bf16.mxu0 %v431
    %599 = vmatpush1.bf16.xpose.msra.mxu0 %v430
    %600 = vmatprep.subr.bf16.mxu0 %v439
    %601 = vmatpush1.bf16.xpose.msra.mxu0 %v438
    %602 = vmatprep.subr.bf16.mxu0 0
    %603 = vmatpush1.bf16.xpose.msra.mxu0 0
    %604 = vmatprep.subr.bf16.mxu0 0
    %605 = vmatpush1.bf16.xpose.msra.mxu0 0
    %606 = vmatprep.subr.bf16.mxu0 0
    %607 = vmatpush1.bf16.xpose.msra.mxu0 0
    %608 = vmatprep.subr.bf16.mxu0 0
    %609 = vmatpush1.bf16.xpose.msra.mxu0 0
    %610 = vmatprep.subr.bf16.mxu0 0
    %611 = vmatpush1.bf16.xpose.msra.mxu0 0
    %612 = vmatprep.subr.bf16.mxu0 0
    %613 = vmatpush1.bf16.xpose.msra.mxu0 0
    %614 = vmatprep.subr.bf16.mxu0 0
    %615 = vmatpush1.bf16.xpose.msra.mxu0 0
    %616 = vmatprep.subr.bf16.mxu0 0
    %617 = vmatpush1.bf16.xpose.msra.mxu0 0
    %618 = vmatprep.mubr.bf16.mxu0 %v112
    %619 = vmatmul.mubr.bf16.gmra.mrb[0].mxu0 %v111
    %v620 = vpop.f32.mrb[0].mxu0
    %v621 = vadd.f32 %v581, %v620
    %v622 = vpop.f32.mrb[0].mxu0
    %v623 = vpop.f32.mrb[0].mxu0
    %v624 = vpop.f32.mrb[0].mxu0
    %625 = vdwg.mxu0
    %626 = vmatprep.subr.bf16.mxu0 %v385
    %627 = vmatpush1.bf16.xpose.msra.mxu0 %v384
    %628 = vmatprep.subr.bf16.mxu0 %v393
    %629 = vmatpush1.bf16.xpose.msra.mxu0 %v392
    %630 = vmatprep.subr.bf16.mxu0 %v401
    %631 = vmatpush1.bf16.xpose.msra.mxu0 %v400
    %632 = vmatprep.subr.bf16.mxu0 %v409
    %633 = vmatpush1.bf16.xpose.msra.mxu0 %v408
    %634 = vmatprep.subr.bf16.mxu0 %v417
    %635 = vmatpush1.bf16.xpose.msra.mxu0 %v416
    %636 = vmatprep.subr.bf16.mxu0 %v425
    %637 = vmatpush1.bf16.xpose.msra.mxu0 %v424
    %638 = vmatprep.subr.bf16.mxu0 %v433
    %639 = vmatpush1.bf16.xpose.msra.mxu0 %v432
    %640 = vmatprep.subr.bf16.mxu0 %v441
    %641 = vmatpush1.bf16.xpose.msra.mxu0 %v440
    %642 = vmatprep.subr.bf16.mxu0 0
    %643 = vmatpush1.bf16.xpose.msra.mxu0 0
    %644 = vmatprep.subr.bf16.mxu0 0
    %645 = vmatpush1.bf16.xpose.msra.mxu0 0
    %646 = vmatprep.subr.bf16.mxu0 0
    %647 = vmatpush1.bf16.xpose.msra.mxu0 0
    %648 = vmatprep.subr.bf16.mxu0 0
    %649 = vmatpush1.bf16.xpose.msra.mxu0 0
    %650 = vmatprep.subr.bf16.mxu0 0
    %651 = vmatpush1.bf16.xpose.msra.mxu0 0
    %652 = vmatprep.subr.bf16.mxu0 0
    %653 = vmatpush1.bf16.xpose.msra.mxu0 0
    %654 = vmatprep.subr.bf16.mxu0 0
    %655 = vmatpush1.bf16.xpose.msra.mxu0 0
    %656 = vmatprep.subr.bf16.mxu0 0
    %657 = vmatpush1.bf16.xpose.msra.mxu0 0
    %658 = vmatprep.mubr.bf16.mxu0 %v114
    %659 = vmatmul.mubr.bf16.gmra.mrb[0].mxu0 %v113
    %v660 = vpop.f32.mrb[0].mxu0
    %v661 = vadd.f32 %v621, %v660
    %v662 = vpop.f32.mrb[0].mxu0
    %v663 = vpop.f32.mrb[0].mxu0
    %v664 = vpop.f32.mrb[0].mxu0
    %665 = vdwg.mxu0
    %v666 = vmax.f32 %v661, 0.0
    %v667 = vpack.c.bf16 %v666, %v666
    %v668 = vld [vmem:[#allocation7] sm:$0xf]
    %v669 = vld [vmem:[#allocation7 + $0x4] sm:$0xf]
    %v670 = vld [vmem:[#allocation7 + $0x8] sm:$0xf]
    %v671 = vld [vmem:[#allocation7 + $0xc] sm:$0xf]
    %v672 = vld [vmem:[#allocation7 + $0x10] sm:$0xf]
    %v673 = vld [vmem:[#allocation7 + $0x14] sm:$0xf]
    %v674 = vld [vmem:[#allocation7 + $0x18] sm:$0xf]
    %v675 = vld [vmem:[#allocation7 + $0x1c] sm:$0xf]
    %v676 = vld [vmem:[#allocation7 + $0x20] sm:$0xf]
    %v677 = vld [vmem:[#allocation7 + $0x24] sm:$0xf]
    %v678 = vld [vmem:[#allocation7 + $0x28] sm:$0xf]
    %v679 = vld [vmem:[#allocation7 + $0x2c] sm:$0xf]
    %v680 = vld [vmem:[#allocation7 + $0x30] sm:$0xf]
    %v681 = vld [vmem:[#allocation7 + $0x34] sm:$0xf]
    %v682 = vld [vmem:[#allocation7 + $0x38] sm:$0xf]
    %v683 = vld [vmem:[#allocation7 + $0x3c] sm:$0xf]
    %v684 = vld [vmem:[%s4] sm:$0x1]
    %v686 = vlaneseq
    %v687 = vshrl.u32 %v686, 7
    %v688 = vsub.s32 0, %v687
    %v689 = vrot.slane %v684, %v688
    %v707 = vunpack.c.l.b16 %v668
    %v708 = vunpack.c.l.b16 %v669
    %v709 = vunpack.c.l.b16 %v670
    %v710 = vunpack.c.l.b16 %v671
    %v711 = vunpack.c.l.b16 %v672
    %v712 = vunpack.c.l.b16 %v673
    %v713 = vunpack.c.l.b16 %v674
    %v714 = vunpack.c.l.b16 %v675
    %v715 = vunpack.c.l.b16 %v676
    %v716 = vunpack.c.l.b16 %v677
    %v717 = vunpack.c.l.b16 %v678
    %v718 = vunpack.c.l.b16 %v679
    %v719 = vunpack.c.l.b16 %v680
    %v720 = vunpack.c.l.b16 %v681
    %v721 = vunpack.c.l.b16 %v682
    %v722 = vunpack.c.l.b16 %v683
    %v723 = vpack.c.b16 %v708, %v707
    %v724 = vpack.c.b16 %v710, %v709
    %v725 = vpack.c.b16 %v712, %v711
    %v726 = vpack.c.b16 %v714, %v713
    %v727 = vpack.c.b16 %v716, %v715
    %v728 = vpack.c.b16 %v718, %v717
    %v729 = vpack.c.b16 %v720, %v719
    %v730 = vpack.c.b16 %v722, %v721
    %739 = vmatprep.subr.bf16.mxu0 0
    %740 = vmatpush1.bf16.xpose.msra.mxu0 %v723
    %741 = vmatprep.subr.bf16.mxu0 0
    %742 = vmatpush1.bf16.xpose.msra.mxu0 %v724
    %743 = vmatprep.subr.bf16.mxu0 0
    %744 = vmatpush1.bf16.xpose.msra.mxu0 %v725
    %745 = vmatprep.subr.bf16.mxu0 0
    %746 = vmatpush1.bf16.xpose.msra.mxu0 %v726
    %747 = vmatprep.subr.bf16.mxu0 0
    %748 = vmatpush1.bf16.xpose.msra.mxu0 %v727
    %749 = vmatprep.subr.bf16.mxu0 0
    %750 = vmatpush1.bf16.xpose.msra.mxu0 %v728
    %751 = vmatprep.subr.bf16.mxu0 0
    %752 = vmatpush1.bf16.xpose.msra.mxu0 %v729
    %753 = vmatprep.subr.bf16.mxu0 0
    %754 = vmatpush1.bf16.xpose.msra.mxu0 %v730
    %755 = vmatprep.subr.bf16.mxu0 0
    %756 = vmatpush1.bf16.xpose.msra.mxu0 0
    %757 = vmatprep.subr.bf16.mxu0 0
    %758 = vmatpush1.bf16.xpose.msra.mxu0 0
    %759 = vmatprep.subr.bf16.mxu0 0
    %760 = vmatpush1.bf16.xpose.msra.mxu0 0
    %761 = vmatprep.subr.bf16.mxu0 0
    %762 = vmatpush1.bf16.xpose.msra.mxu0 0
    %763 = vmatprep.subr.bf16.mxu0 0
    %764 = vmatpush1.bf16.xpose.msra.mxu0 0
    %765 = vmatprep.subr.bf16.mxu0 0
    %766 = vmatpush1.bf16.xpose.msra.mxu0 0
    %767 = vmatprep.subr.bf16.mxu0 0
    %768 = vmatpush1.bf16.xpose.msra.mxu0 0
    %769 = vmatprep.subr.bf16.mxu0 0
    %770 = vmatpush1.bf16.xpose.msra.mxu0 0
    %771 = vmatprep.mubr.bf16.mxu0 0
    %772 = vmatmul.mubr.bf16.gmra.mrb[0].mxu0 %v667
    %v773 = vpop.f32.mrb[0].mxu0
    %v774 = vadd.f32 %v689, %v773
    %v775 = vpop.f32.mrb[0].mxu0
    %v776 = vpop.f32.mrb[0].mxu0
    %v777 = vpop.f32.mrb[0].mxu0
    %778 = vdwg.mxu0
    %779 = vst [vmem:[#allocation8] sm:$0x3] %v774
    // Predicated region
    $region34: #{tpu_custom_call.1} parent=1 // pred_check
      _
    $region35: #{tpu_custom_call.1} parent=1 // pred_check_branch
      %781 = sbr.rel (0) target = $region37
    $region36: #{tpu_custom_call.1} parent=1 // pred_region
      %s783 = ssub.s32 32, 32
      %784 = vsyncadd [#allocation4], %s783
      %s786 = sshll.u32 [#allocation8], 4
      %s787 = int_to_ptr.vmem [resolvable:$true] %s786
      %789 = dma.vmem_to_hbm [thread:$0]  %s787, 32, %s5, [#allocation4]
    $region37: #{tpu_custom_call.1} parent=1 // pred_fallthru
      _
    // Predicated region
    $region38: #{tpu_custom_call.1} parent=1 // pred_check
      _
    $region39: #{tpu_custom_call.1} parent=1 // pred_check_branch
      %791 = sbr.rel (0) target = $region41
    $region40: #{tpu_custom_call.1} parent=1 // pred_region
      %792 = dma.done [#allocation4], 32
    $region41: #{tpu_custom_call.1} parent=1 // pred_fallthru
      _
    %793 = vsyncpa [#allocation3], 1
    %794 = vsyncpa [#allocation6], 1
    %795 = vsyncpa [#allocation4], 1

</llo_original>
